<compile_context>
chip_gen: v6e
topology: v6e:2x2x1
jax: 0.10.0
libtpu: 0.0.40
codegen_flags: <defaults>
</compile_context>

<pallas_src>
import functools

import jax
import jax.numpy as jnp
from jax.experimental import pallas as pl
from jax.experimental.pallas import tpu as pltpu


def _label_smoothing_kernel(x_ref, tgt_ref, *rest, confidence, off_value,
                            batch, block_rows, has_weight):
    if has_weight:
        w_ref, part_ref = rest
    else:
        (part_ref,) = rest

    i = pl.program_id(0)

    x = x_ref[...].astype(jnp.float32)                     # (TB, C)
    tb, c = x.shape

    # Row-stable log-softmax pieces; logp = z - lse is never materialized.
    m = jnp.max(x, axis=-1, keepdims=True)
    z = x - m
    lse = jnp.log(jnp.sum(jnp.exp(z), axis=-1, keepdims=True))   # (TB, 1)

    cls_idx = jax.lax.broadcasted_iota(jnp.int32, (tb, c), 1)
    onehot = cls_idx == tgt_ref[...]                        # (TB, C)

    if has_weight:
        w = w_ref[...].astype(jnp.float32)                  # (1, C)
        wz = z * w
        sum_w = jnp.sum(w, axis=-1, keepdims=True)                      # (1, 1)
        sum_wlogp = jnp.sum(wz, axis=-1, keepdims=True) - lse * sum_w   # (TB,1)
        wz_t = jnp.sum(jnp.where(onehot, wz, 0.0), axis=-1, keepdims=True)
        w_t = jnp.sum(jnp.where(onehot, w, 0.0), axis=-1, keepdims=True)
        tgt_term = wz_t - lse * w_t                         # (w*logp)[target]
    else:
        sum_wlogp = jnp.sum(z, axis=-1, keepdims=True) - lse * float(c)
        z_t = jnp.sum(jnp.where(onehot, z, 0.0), axis=-1, keepdims=True)
        tgt_term = z_t - lse                                # logp[target]

    per_row = -(off_value * sum_wlogp + (confidence - off_value) * tgt_term)

    # Mask ragged-edge rows of the last partial block (garbage logits there
    # must not pollute the sum; 1/B normalization happens in the wrapper).
    row_idx = i * block_rows + jax.lax.broadcasted_iota(jnp.int32, (tb, 1), 0)
    per_row = jnp.where(row_idx < batch, per_row, 0.0)

    tile_sum = jnp.sum(per_row)

    # Lane-aligned (8,128) partial block: scalar at [0,0], zeros elsewhere.
    r8 = jax.lax.broadcasted_iota(jnp.int32, (8, 128), 0)
    c128 = jax.lax.broadcasted_iota(jnp.int32, (8, 128), 1)
    part_ref[...] = jnp.where((r8 == 0) & (c128 == 0), tile_sum, 0.0)


def _choose_block_rows(batch, n_classes, itemsize, block_rows=None):
    """Pick a batch tile: as large as the VMEM budget allows, sublane-aligned."""
    if block_rows is None:
        per_row_bytes = n_classes * itemsize
        budget = 12 * 1024 * 1024          # per (double-buffered) input buffer
        block_rows = max(8, min(1024, budget // per_row_bytes))
    block_rows = int(block_rows)
    if block_rows >= batch:
        return batch                       # one block == full array dims
    return max(8, (block_rows // 8) * 8)   # tiled: keep multiple of 8 rows


def label_smoothing_loss(outputs, target, *, n_classes, smoothing=0.1,
                         weight=None, block_rows=None):
    """outputs: (B, C) float (f32/bf16), target: (B,) int -> scalar mean loss."""
    if not (0.0 <= smoothing <= 1.0):
        raise ValueError("smoothing must be in range [0, 1].")
    if n_classes < 2:
        raise ValueError("n_classes must be >= 2 for label smoothing.")
    B, C = outputs.shape
    assert C == n_classes

    confidence = 1.0 - smoothing
    off_value = smoothing / (n_classes - 1)

    tb = _choose_block_rows(B, C, jnp.dtype(outputs.dtype).itemsize, block_rows)
    num_tiles = -(-B // tb)

    tgt2d = target.astype(jnp.int32).reshape(B, 1)

    in_specs = [
        pl.BlockSpec((tb, C), lambda i: (i, 0)),     # logits (native dtype)
        pl.BlockSpec((tb, 1), lambda i: (i, 0)),     # targets
    ]
    args = [outputs, tgt2d]
    has_weight = weight is not None
    if has_weight:
        w = jnp.asarray(weight, jnp.float32).reshape(1, C)
        in_specs.append(pl.BlockSpec((1, C), lambda i: (0, 0)))
        args.append(w)

    kernel = functools.partial(
        _label_smoothing_kernel,
        confidence=float(confidence),
        off_value=float(off_value),
        batch=B,
        block_rows=tb,
        has_weight=has_weight,
    )

    partials = pl.pallas_call(
        kernel,
        grid=(num_tiles,),
        in_specs=in_specs,
        out_specs=pl.BlockSpec((8, 128), lambda i: (i, 0)),
        out_shape=jax.ShapeDtypeStruct((num_tiles * 8, 128), jnp.float32),
        compiler_params=pltpu.CompilerParams(
            dimension_semantics=("parallel",),
            vmem_limit_bytes=48 * 1024 * 1024,
        ),
    )(*args)

    # Final reduction + 1/B normalization hoisted out of the kernel.
    return jnp.sum(partials) / B


def _reference(outputs, target, *, n_classes, smoothing=0.1, weight=None):
    logp = jax.nn.log_softmax(outputs.astype(jnp.float32), axis=-1)
    if weight is not None:
        logp = logp * jnp.asarray(weight, jnp.float32)[None, :]
    off = smoothing / (n_classes - 1)
    true_dist = jnp.full_like(logp, off)
    true_dist = true_dist.at[jnp.arange(outputs.shape[0]), target].set(1.0 - smoothing)
    return jnp.mean(jnp.sum(-true_dist * logp, axis=-1))


if __name__ == "__main__":
    key = jax.random.PRNGKey(0)
    B, C = 8, 32
    k1, k2, k3 = jax.random.split(key, 3)
    outputs = jax.random.normal(k1, (B, C), jnp.float32)
    target = jax.random.randint(k2, (B,), 0, C, jnp.int32)

    # 1) unweighted, f32
    loss = jax.block_until_ready(
        label_smoothing_loss(outputs, target, n_classes=C, smoothing=0.1))
    ref = _reference(outputs, target, n_classes=C, smoothing=0.1)
    assert jnp.allclose(loss, ref, atol=1e-5, rtol=1e-5), (loss, ref)

    # 2) with per-class rescaling weight
    weight = list(jax.random.uniform(k3, (C,), jnp.float32, 0.5, 1.5))
    loss_w = jax.block_until_ready(
        label_smoothing_loss(outputs, target, n_classes=C, smoothing=0.1,
                             weight=weight))
    ref_w = _reference(outputs, target, n_classes=C, smoothing=0.1,
                       weight=jnp.asarray(weight, jnp.float32))
    assert jnp.allclose(loss_w, ref_w, atol=1e-5, rtol=1e-5), (loss_w, ref_w)

    # 3) multi-tile grid with ragged last batch tile (forces the row mask)
    B2 = 20
    k4, k5 = jax.random.split(k1)
    outputs2 = jax.random.normal(k4, (B2, C), jnp.float32)
    target2 = jax.random.randint(k5, (B2,), 0, C, jnp.int32)
    loss2 = jax.block_until_ready(
        label_smoothing_loss(outputs2, target2, n_classes=C, smoothing=0.1,
                             block_rows=8))
    ref2 = _reference(outputs2, target2, n_classes=C, smoothing=0.1)
    assert jnp.allclose(loss2, ref2, atol=1e-5, rtol=1e-5), (loss2, ref2)

    # 4) bf16 logits (half the HBM bytes; math still f32 inside the kernel)
    outputs_bf16 = outputs.astype(jnp.bfloat16)
    loss_bf = jax.block_until_ready(
        label_smoothing_loss(outputs_bf16, target, n_classes=C, smoothing=0.1))
    ref_bf = _reference(outputs_bf16, target, n_classes=C, smoothing=0.1)
    assert jnp.allclose(loss_bf, ref_bf, atol=1e-4, rtol=1e-4), (loss_bf, ref_bf)

    print("KERNEL_OK")
</pallas_src>

<mosaic_0001>
module attributes {stable_mosaic.version = 11 : i64} {
  func.func @_label_smoothing_kernel(%arg0: i32, %arg1: memref<8x32xf32, #tpu.memory_space<vmem>>, %arg2: memref<8x1xi32, #tpu.memory_space<vmem>>, %arg3: memref<8x128xf32, #tpu.memory_space<vmem>>) attributes {dimension_semantics = [#tpu.dimension_semantics<parallel>], iteration_bounds = array<i64: 1>, scalar_prefetch = 0 : i64, scratch_operands = 0 : i64, tpu.core_type = #tpu.core_type<tc>, window_params = [{transform_indices = @transform_0, window_bounds = array<i64: 8, 32>}, {transform_indices = @transform_1, window_bounds = array<i64: 8, 1>}, {transform_indices = @transform_2, window_bounds = array<i64: 8, 128>}]} {
    %c0 = arith.constant 0 : index
    %c0_0 = arith.constant 0 : index
    %0 = vector.load %arg1[%c0, %c0_0] : memref<8x32xf32, #tpu.memory_space<vmem>>, vector<8x32xf32>
    %cst = arith.constant dense<0xFF800000> : vector<8xf32>
    %1 = vector.multi_reduction <maximumf>, %0, %cst [1] : vector<8x32xf32> to vector<8xf32>
    %2 = vector.shape_cast %1 : vector<8xf32> to vector<8x1xf32>
    %3 = vector.broadcast %2 : vector<8x1xf32> to vector<8x32xf32>
    %4 = arith.subf %0, %3 : vector<8x32xf32>
    %5 = math.exp %4 : vector<8x32xf32>
    %cst_1 = arith.constant dense<0.000000e+00> : vector<8xf32>
    %6 = vector.multi_reduction <add>, %5, %cst_1 [1] : vector<8x32xf32> to vector<8xf32>
    %7 = vector.shape_cast %6 : vector<8xf32> to vector<8x1xf32>
    %8 = math.log %7 : vector<8x1xf32>
    %9 = tpu.iota {dimensions = array<i32: 1>} : vector<8x32xi32>
    %c0_2 = arith.constant 0 : index
    %c0_3 = arith.constant 0 : index
    %10 = vector.load %arg2[%c0_2, %c0_3] : memref<8x1xi32, #tpu.memory_space<vmem>>, vector<8x1xi32>
    %11 = vector.broadcast %10 : vector<8x1xi32> to vector<8x32xi32>
    %12 = arith.cmpi eq, %9, %11 : vector<8x32xi32>
    %cst_4 = arith.constant dense<0.000000e+00> : vector<8xf32>
    %13 = vector.multi_reduction <add>, %4, %cst_4 [1] : vector<8x32xf32> to vector<8xf32>
    %14 = vector.shape_cast %13 : vector<8xf32> to vector<8x1xf32>
    %cst_5 = arith.constant 3.200000e+01 : f32
    %15 = vector.broadcast %cst_5 : f32 to vector<8x1xf32>
    %16 = arith.mulf %8, %15 : vector<8x1xf32>
    %17 = arith.subf %14, %16 : vector<8x1xf32>
    %cst_6 = arith.constant 0.000000e+00 : f32
    %18 = vector.broadcast %cst_6 : f32 to vector<8x32xf32>
    %19 = arith.select %12, %4, %18 : vector<8x32xi1>, vector<8x32xf32>
    %cst_7 = arith.constant dense<0.000000e+00> : vector<8xf32>
    %20 = vector.multi_reduction <add>, %19, %cst_7 [1] : vector<8x32xf32> to vector<8xf32>
    %21 = vector.shape_cast %20 : vector<8xf32> to vector<8x1xf32>
    %22 = arith.subf %21, %8 : vector<8x1xf32>
    %cst_8 = arith.constant 0.0032258064 : f32
    %23 = vector.broadcast %cst_8 : f32 to vector<8x1xf32>
    %24 = arith.mulf %23, %17 : vector<8x1xf32>
    %cst_9 = arith.constant 0.896774172 : f32
    %25 = vector.broadcast %cst_9 : f32 to vector<8x1xf32>
    %26 = arith.mulf %25, %22 : vector<8x1xf32>
    %27 = arith.addf %24, %26 : vector<8x1xf32>
    %cst_10 = arith.constant 0.000000e+00 : f32
    %28 = vector.broadcast %cst_10 : f32 to vector<8x1xf32>
    %29 = arith.subf %28, %27 : vector<8x1xf32>
    %c8_i32 = arith.constant 8 : i32
    %30 = arith.muli %arg0, %c8_i32 : i32
    %31 = tpu.iota {dimensions = array<i32: 0>} : vector<8x1xi32>
    %32 = vector.broadcast %30 : i32 to vector<8x1xi32>
    %33 = arith.addi %32, %31 : vector<8x1xi32>
    %c8_i32_11 = arith.constant 8 : i32
    %34 = vector.broadcast %c8_i32_11 : i32 to vector<8x1xi32>
    %35 = arith.cmpi slt, %33, %34 : vector<8x1xi32>
    %cst_12 = arith.constant 0.000000e+00 : f32
    %36 = vector.broadcast %cst_12 : f32 to vector<8x1xf32>
    %37 = arith.select %35, %29, %36 : vector<8x1xi1>, vector<8x1xf32>
    %38 = vector.shape_cast %37 : vector<8x1xf32> to vector<1x8x1xf32>
    %cst_13 = arith.constant dense<0.000000e+00> : vector<1xf32>
    %39 = vector.multi_reduction <add>, %38, %cst_13 [1, 2] : vector<1x8x1xf32> to vector<1xf32>
    %40 = vector.shape_cast %39 : vector<1xf32> to vector<1x1x1xf32>
    %41 = vector.extract %40[0, 0, 0] : f32 from vector<1x1x1xf32>
    %42 = tpu.iota {dimensions = array<i32: 0>} : vector<8x128xi32>
    %43 = tpu.iota {dimensions = array<i32: 1>} : vector<8x128xi32>
    %c0_i32 = arith.constant 0 : i32
    %44 = vector.broadcast %c0_i32 : i32 to vector<8x128xi32>
    %45 = arith.cmpi eq, %42, %44 : vector<8x128xi32>
    %c0_i32_14 = arith.constant 0 : i32
    %46 = vector.broadcast %c0_i32_14 : i32 to vector<8x128xi32>
    %47 = arith.cmpi eq, %43, %46 : vector<8x128xi32>
    %48 = arith.andi %45, %47 : vector<8x128xi1>
    %cst_15 = arith.constant 0.000000e+00 : f32
    %49 = vector.broadcast %41 : f32 to vector<8x128xf32>
    %50 = vector.broadcast %cst_15 : f32 to vector<8x128xf32>
    %51 = arith.select %48, %49, %50 : vector<8x128xi1>, vector<8x128xf32>
    %c0_16 = arith.constant 0 : index
    %c0_17 = arith.constant 0 : index
    %52 = vector.load %arg3[%c0_16, %c0_17] : memref<8x128xf32, #tpu.memory_space<vmem>>, vector<8x128xf32>
    tpu.vector_store %arg3[%c0_16, %c0_17], %51 {strides = array<i32>} : memref<8x128xf32, #tpu.memory_space<vmem>>, vector<8x128xf32>,
    return
  }
  func.func @transform_0(%arg0: i32) -> (i32, i32) {
    %c0_i32 = arith.constant 0 : i32
    %c0_i32_0 = arith.constant 0 : i32
    return %arg0, %c0_i32 : i32, i32
  }
  func.func @transform_1(%arg0: i32) -> (i32, i32) {
    %c0_i32 = arith.constant 0 : i32
    %c0_i32_0 = arith.constant 0 : i32
    return %arg0, %c0_i32 : i32, i32
  }
  func.func @transform_2(%arg0: i32) -> (i32, i32) {
    %c0_i32 = arith.constant 0 : i32
    %c0_i32_0 = arith.constant 0 : i32
    return %arg0, %c0_i32 : i32, i32
  }
}

</mosaic_0001>

<llo_original>
// kernel: tpu_custom_call.1
$region0: #{tpu_custom_call.1}
  #allocation0 [shape = 'u32[]', space=smem, size = 0x4, offset = 0x4, fixed_abs, tag = 'smem constant byte address 0x4 - core index']
  #allocation1 [shape = 'u32[144,128]{1,0:T(1,128)}', space=vmem, size = 0x12000, scoped, tag = 'internal scratch']
  %s0 = inlined_call_operand.vmem [shape: f32[8,32], index: 0, kind: input, shape index: {}]
  %s1 = inlined_call_operand.vmem [shape: s32[8,1], index: 1, kind: input, shape index: {}]
  %s2 = inlined_call_operand.hbm [shape: f32[8,128], index: 2, kind: output, shape index: {}]
  %s3 = sld [smem:[#allocation0]]
  $region18: #{tpu_custom_call.1} parent=0
    _
  %s5 = ssub.s32 1, %s3
  %s6 = scalar_select 0, %s5, %s3
  $region1: #{tpu_custom_call.1} parent=0
    #allocation2 [shape = 'u8[4096]{0}', space=vmem, size = 0x1000, scoped, tag = 'output window, operand 0, single buffered']
    #allocation3 [shape = 's32[1]{0}', space=sflag, size = 0x4, scoped, tag = 'scoped memory for tpu_custom_call.1']
    %7 = vsyncpa [#allocation3], 0
    // Predicated region
    $region2: #{tpu_custom_call.1} parent=1 // pred_check
      _
    $region3: #{tpu_custom_call.1} parent=1 // pred_check_branch
      %9 = sbr.rel (0) target = $region5
    $region4: #{tpu_custom_call.1} parent=1 // pred_region
      _
    $region5: #{tpu_custom_call.1} parent=1 // pred_fallthru
      _
    // Predicated region
    $region6: #{tpu_custom_call.1} parent=1 // pred_check
      _
    $region7: #{tpu_custom_call.1} parent=1 // pred_check_branch
      %11 = sbr.rel (0) target = $region9
    $region8: #{tpu_custom_call.1} parent=1 // pred_region
      _
    $region9: #{tpu_custom_call.1} parent=1 // pred_fallthru
      _
    %v12 = vld [vmem:[%s0] sm:$0xff]
    %vm13 = vcmask 261120
    %v14 = vsel %vm13, %v12, -inf
    %15 = vmax.xlane.f32.xlu0 %v14
    %v16 = vpop.xlane.xlu0 %15
    %v17 = vsub.f32 %v12, %v16
    %v18 = vmul.f32 %v17, 1.442695
    %v19 = vpow.pop %v18
    %v20 = vsel %vm13, %v19, 0.0
    %21 = vadd.xlane.f32.xlu0 %v20
    %v22 = vpop.xlane.xlu0 %21
    %v23 = vlog2.pop %v22
    %v24 = vmul.f32 %v23, 0.6931472
    %v25 = vlaneseq
    %v26 = vand.u32 %v25, 127
    %v27 = vld [vmem:[%s1] sm:$0xff]
    %28 = vset.pattern.permute.xlu0 0
    %29 = vperm.xlu0 %28, %v27
    %v30 = vpop.permute.xlu0 %29
    %vm31 = vcmp.eq.s32.totalorder %v26, %v30
    %v32 = vsel %vm13, %v17, 0.0
    %33 = vadd.xlane.f32.xlu0 %v32
    %v34 = vpop.xlane.xlu0 %33
    %v35 = vmul.f32 %v24, 32.0
    %v36 = vsub.f32 %v34, %v35
    %v37 = vsel %vm31, %v17, 0.0
    %v38 = vsel %vm13, %v37, 0.0
    %39 = vadd.xlane.f32.xlu0 %v38
    %v40 = vpop.xlane.xlu0 %39
    %v41 = vsub.f32 %v40, %v24
    %v42 = vmul.f32 %v36, 0.0032258064
    %v43 = vmul.f32 %v41, 0.8967742
    %v44 = vadd.f32 %v42, %v43
    %v45 = vsub.f32 0.0, %v44
    %s46 = smul.u32 0, 8
    %v47 = vlaneseq
    %v48 = vshrl.u32 %v47, 7
    %v49 = vstv %s46
    %v50 = vadd.s32 %v49, %v48
    %vm51 = vcmp.lt.s32.totalorder %v50, 8
    %v52 = vsel %vm51, %v45, 0.0
    %vm53 = vcmask 7168
    %v54 = vsel %vm53, %v52, 0.0
    %55 = vadd.xlane.f32.xlu0 %v54
    %v56 = vpop.xlane.xlu0 %55
    %v57 = vrot.slane %v56, 4
    %v58 = vadd.f32 %v56, %v57
    %v59 = vrot.slane %v58, 2
    %v60 = vadd.f32 %v58, %v59
    %v61 = vrot.slane %v60, 1
    %v62 = vadd.f32 %v60, %v61
    %s63 = vtos %v62
    %vm64 = vcmp.eq.s32.totalorder %v48, 0
    %vm65 = vcmp.eq.s32.totalorder %v26, 0
    %vm66 = vmand %vm64, %vm65
    %v67 = vstv %s63
    %v68 = vsel %vm66, %v67, 0.0
    %69 = vst [vmem:[#allocation2] sm:$0xff] %v68
    // Predicated region
    $region10: #{tpu_custom_call.1} parent=1 // pred_check
      _
    $region11: #{tpu_custom_call.1} parent=1 // pred_check_branch
      %71 = sbr.rel (0) target = $region13
    $region12: #{tpu_custom_call.1} parent=1 // pred_region
      %s73 = ssub.s32 128, 128
      %74 = vsyncadd [#allocation3], %s73
      %s76 = sshll.u32 [#allocation2], 4
      %s77 = int_to_ptr.vmem [resolvable:$true] %s76
      %79 = dma.vmem_to_hbm [thread:$0]  %s77, 128, %s2, [#allocation3]
    $region13: #{tpu_custom_call.1} parent=1 // pred_fallthru
      _
    // Predicated region
    $region14: #{tpu_custom_call.1} parent=1 // pred_check
      _
    $region15: #{tpu_custom_call.1} parent=1 // pred_check_branch
      %81 = sbr.rel (0) target = $region17
    $region16: #{tpu_custom_call.1} parent=1 // pred_region
      %82 = dma.done [#allocation3], 128
    $region17: #{tpu_custom_call.1} parent=1 // pred_fallthru
      _
    %83 = vsyncpa [#allocation3], 1

</llo_original>
